<compile_context>
chip_gen: v7x
topology: tpu7x:2x2x1
jax: 0.10.0
libtpu: 0.0.40
codegen_flags: <defaults>
</compile_context>

<pallas_src>
import jax
import jax.numpy as jnp
from jax import lax
from jax.experimental import pallas as pl
from jax.experimental.pallas import tpu as pltpu


def _vmem_budgets():
    """Generation-aware VMEM budgets: (output-block budget, kernel vmem limit)."""
    try:
        cap = int(pltpu.get_tpu_info().vmem_capacity_bytes)
    except Exception:
        cap = 128 * 1024 * 1024
    # 128 MiB parts (v5e/v6e) -> 100 MiB limit / ~12 MiB out-block budget;
    # 64 MiB parts (v7x)      -> 36 MiB limit  / ~4.5 MiB out-block budget.
    limit = max(min(cap - 28 * 1024 * 1024, 100 * 1024 * 1024), 32 * 1024 * 1024)
    out_budget = max(min(limit // 8, 16 * 1024 * 1024), 2 * 1024 * 1024)
    return out_budget, limit


def _pick_tile_rows(H, W, Cout, out_block_budget_bytes):
    """Largest row-tile TH dividing H whose double-buffered bf16 output block fits the
    budget; lane extent TH*W must be a multiple of 128 (or TH == H), and TH >= 2
    (or TH == H) so the halo window always fits inside the flattened image."""
    cands = [th for th in range(1, H + 1)
             if H % th == 0
             and ((th * W) % 128 == 0 or th == H)
             and (th >= 2 or th == H)]
    fitting = [th for th in cands if 2 * Cout * th * W * 2 <= out_block_budget_bytes]
    return max(fitting) if fitting else min(cands)


def _make_kernel(Cin, W, TILE, HT, PAD, HW):
    L = TILE + 2 * PAD
    K = 3 * Cin + 1

    def kernel(x_ref, w_ref, a_ref, o_ref, g_ref):
        # x_ref : (1, Cin, HW)    f32   full image (resident per image)
        # w_ref : (3, Cout, K)    bf16  per-dy tap weights; last column = bias (dy==0)
        # a_ref : (1,)            f32   PReLU slope (SMEM)
        # o_ref : (1, Cout, TILE) bf16  conv-output row tile (lane-dense)
        # g_ref : (K, L)          bf16  pre-masked / pre-shifted dx tap groups + ones row
        t = pl.program_id(1)

        # Column masks in window-lane coordinates: source col of lane l is (l - PAD) % W.
        # A handful of VPU ops on (1, L); recomputed per tile so the row-tile axis stays
        # dependency-free (both grid axes "parallel").
        lane = lax.broadcasted_iota(jnp.int32, (1, L), 1)
        srccol = (lane + (W - 1)) % W
        keep_l = srccol != (W - 1)      # dx = -1 taps never read source column W-1
        keep_r = srccol != 0            # dx = +1 taps never read source column 0

        def build(win):                 # win: (Cin, L) f32, zero vertical halo included
            g_ref[Cin:2 * Cin, :] = win.astype(jnp.bfloat16)
            wl = jnp.where(keep_l, win, 0.0).astype(jnp.bfloat16)
            wr = jnp.where(keep_r, win, 0.0).astype(jnp.bfloat16)
            # dx=-1 group: G0[l] = masked[l-1]; dx=+1 group: G2[l] = masked[l+1].
            # Lanes 0 / L-1 of these rows are never read by the matmul slices below.
            g_ref[0:Cin, 1:L] = wl[:, 0:L - 1]
            g_ref[2 * Cin:3 * Cin, 0:L - 1] = wr[:, 1:L]
            g_ref[3 * Cin:K, :] = jnp.ones((1, L), jnp.bfloat16)    # bias ones row

        zhalo = jnp.zeros((Cin, PAD), jnp.float32)
        if HT == 1:
            build(jnp.concatenate([zhalo, x_ref[0], zhalo], axis=-1))
        else:
            @pl.when(t == 0)
            def _():
                build(jnp.concatenate([zhalo, x_ref[0, :, 0:TILE + PAD]], axis=-1))

            @pl.when(t == HT - 1)
            def _():
                build(jnp.concatenate([x_ref[0, :, HW - TILE - PAD:HW], zhalo], axis=-1))

            if HT > 2:
                @pl.when(jnp.logical_and(t > 0, t < HT - 1))
                def _():
                    build(x_ref[0, :, pl.ds(t * TILE - PAD, L)])

        # 3 accumulating MXU matmuls (one per dy); operands are contiguous lane slices
        # of the tap-group scratch (bias folded in via the ones row / bias column).
        acc = jnp.dot(w_ref[0], g_ref[:, pl.ds(PAD - W, TILE)],
                      preferred_element_type=jnp.float32)
        acc += jnp.dot(w_ref[1], g_ref[:, pl.ds(PAD, TILE)],
                       preferred_element_type=jnp.float32)
        acc += jnp.dot(w_ref[2], g_ref[:, pl.ds(PAD + W, TILE)],
                       preferred_element_type=jnp.float32)

        alpha = a_ref[0]                                  # SMEM scalar
        y = jnp.where(acc > 0, acc, alpha * acc)          # PReLU (single shared slope)
        o_ref[0] = y.astype(o_ref.dtype)

    return kernel


def upsample_block(x_nchw, weight_oihw, bias, alpha, up_scale):
    """Forward pass of UpsampleBLock. Input/output are NCHW (PyTorch convention), f32."""
    N, Cin, H, W = x_nchw.shape
    r = int(up_scale)
    Cout = Cin * r * r
    assert weight_oihw.shape == (Cout, Cin, 3, 3)
    HW = H * W

    out_budget, vmem_limit = _vmem_budgets()
    TH = _pick_tile_rows(H, W, Cout, out_budget)
    HT = H // TH
    TILE = TH * W
    PAD = W + 1                          # one halo row + one halo column on each side
    L = TILE + 2 * PAD
    K = 3 * Cin + 1

    # Activations stay f32 in HBM (cast to bf16 in-kernel after the DMA).  Weights are
    # reordered to (dy, Cout, dx*Cin + ci) and the bias is appended as an extra column
    # (matched by the ones row of the in-kernel tap-group scratch).
    x_flat = x_nchw.reshape(N, Cin, HW).astype(jnp.float32)
    w_r = jnp.transpose(weight_oihw, (2, 0, 3, 1)).reshape(3, Cout, 3 * Cin)
    b_col = jnp.stack([jnp.zeros_like(bias), bias, jnp.zeros_like(bias)], axis=0)
    w_mat = jnp.concatenate([w_r, b_col[:, :, None]], axis=-1).astype(jnp.bfloat16)
    a_vec = jnp.reshape(alpha, (1,)).astype(jnp.float32)

    kernel = _make_kernel(Cin, W, TILE, HT, PAD, HW)

    conv_out = pl.pallas_call(
        kernel,
        out_shape=jax.ShapeDtypeStruct((N, Cout, HW), jnp.bfloat16),
        grid_spec=pltpu.PrefetchScalarGridSpec(
            num_scalar_prefetch=0,
            grid=(N, HT),
            in_specs=[
                # TODO(synk): row-tile the input (manual halo DMA) for very large images.
                pl.BlockSpec((1, Cin, HW), lambda n, t: (n, 0, 0)),
                pl.BlockSpec((3, Cout, K), lambda n, t: (0, 0, 0)),
                pl.BlockSpec(memory_space=pltpu.MemorySpace.SMEM),    # PReLU slope
            ],
            out_specs=pl.BlockSpec((1, Cout, TILE), lambda n, t: (n, 0, t)),
            scratch_shapes=[pltpu.VMEM((K, L), jnp.bfloat16)],
        ),
        compiler_params=pltpu.CompilerParams(
            dimension_semantics=("parallel", "parallel"),
            vmem_limit_bytes=vmem_limit,
        ),
    )(x_flat, w_mat, a_vec)

    # PixelShuffle: conv channel c*r*r + i*r + j -> spatial (h*r+i, w*r+j) of channel c.
    # Done on the bf16 conv output; transpose + f32 convert is a single XLA pass.
    # TODO(synk): fuse this sub-pixel interleave into the kernel's store to remove it.
    y = conv_out.reshape(N, Cin, r, r, H, W)
    y = jnp.transpose(y, (0, 1, 4, 2, 5, 3)).reshape(N, Cin, H * r, W * r)
    return y.astype(jnp.float32)


def _reference(x_nchw, weight_oihw, bias, alpha, up_scale, match_kernel_precision=True):
    """Pure-JAX reference (conv -> pixel_shuffle -> prelu).  With
    match_kernel_precision=True the conv operands are cast to bf16 (f32 accumulation),
    matching the kernel's MXU precision so a tight tolerance can be used."""
    N, Cin, H, W = x_nchw.shape
    r = int(up_scale)
    if match_kernel_precision:
        x_c = x_nchw.astype(jnp.bfloat16)
        w_c = weight_oihw.astype(jnp.bfloat16)
    else:
        x_c = x_nchw.astype(jnp.float32)
        w_c = weight_oihw.astype(jnp.float32)
    y = lax.conv_general_dilated(
        x_c, w_c, window_strides=(1, 1), padding=((1, 1), (1, 1)),
        dimension_numbers=("NCHW", "OIHW", "NCHW"),
        preferred_element_type=jnp.float32)
    y = y + bias.reshape(1, -1, 1, 1).astype(jnp.float32)
    y = y.reshape(N, Cin, r, r, H, W)
    y = jnp.transpose(y, (0, 1, 4, 2, 5, 3)).reshape(N, Cin, H * r, W * r)
    return jnp.where(y > 0, y, alpha * y)


if __name__ == "__main__":
    # Small deterministic example consistent with the module:
    # in_channels=4, up_scale=2, batch=2, spatial=16x16
    in_channels, up_scale = 4, 2
    N, H, W = 2, 16, 16
    Cout = in_channels * up_scale ** 2

    key = jax.random.PRNGKey(0)
    kx, kw, kb = jax.random.split(key, 3)
    x = jax.random.normal(kx, (N, in_channels, H, W), dtype=jnp.float32)
    weight = 0.1 * jax.random.normal(kw, (Cout, in_channels, 3, 3), dtype=jnp.float32)
    bias = 0.1 * jax.random.normal(kb, (Cout,), dtype=jnp.float32)
    alpha = jnp.float32(0.25)   # PyTorch PReLU default init

    fwd = jax.jit(upsample_block, static_argnums=(4,))
    out = jax.block_until_ready(fwd(x, weight, bias, alpha, up_scale))
    assert out.shape == (N, in_channels, H * up_scale, W * up_scale), out.shape
    assert out.dtype == jnp.float32

    # Precision-matched reference (bf16 matmul operands, f32 accumulation).  The kernel
    # additionally rounds its writeback to bf16, hence the slightly looser tolerance.
    ref = jax.block_until_ready(_reference(x, weight, bias, alpha, up_scale))
    err = float(jnp.max(jnp.abs(out - ref)))
    assert err < 3e-2, err

    print("KERNEL_OK")
</pallas_src>

<mosaic_0001>
module attributes {stable_mosaic.version = 11 : i64} {
  func.func @kernel(%arg0: i32, %arg1: i32, %arg2: memref<1x4x256xf32, #tpu.memory_space<vmem>>, %arg3: memref<3x16x13xbf16, #tpu.memory_space<vmem>>, %arg4: memref<1xf32, #tpu.memory_space<smem>>, %arg5: memref<1x16x256xbf16, #tpu.memory_space<vmem>>, %arg6: memref<13x290xbf16, #tpu.memory_space<vmem>>) attributes {dimension_semantics = [#tpu.dimension_semantics<parallel>, #tpu.dimension_semantics<parallel>], iteration_bounds = array<i64: 2, 1>, scalar_prefetch = 0 : i64, scratch_operands = 1 : i64, tpu.core_type = #tpu.core_type<tc>, window_params = [{transform_indices = @transform_0, window_bounds = array<i64: 1, 4, 256>}, {pipeline_mode = #tpu.pipeline_mode<synchronous>, transform_indices = @transform_1, window_bounds = array<i64: 3, 16, 13>}, {transform_indices = @transform_2, window_bounds = array<i64: 1>}, {transform_indices = @transform_3, window_bounds = array<i64: 1, 16, 256>}]} {
    %0 = tpu.iota {dimensions = array<i32: 1>} : vector<1x290xi32>
    %c15_i32 = arith.constant 15 : i32
    %1 = vector.broadcast %c15_i32 : i32 to vector<1x290xi32>
    %2 = arith.addi %0, %1 : vector<1x290xi32>
    %c16_i32 = arith.constant 16 : i32
    %c0_i32 = arith.constant 0 : i32
    %3 = arith.cmpi eq, %c16_i32, %c0_i32 : i32
    %c1_i32 = arith.constant 1 : i32
    %4 = arith.select %3, %c1_i32, %c16_i32 : i32
    %5 = vector.broadcast %4 : i32 to vector<1x290xi32>
    %6 = arith.remsi %2, %5 : vector<1x290xi32>
    %c0_i32_0 = arith.constant 0 : i32
    %7 = vector.broadcast %c0_i32_0 : i32 to vector<1x290xi32>
    %8 = arith.cmpi ne, %6, %7 : vector<1x290xi32>
    %c0_i32_1 = arith.constant 0 : i32
    %9 = vector.broadcast %c0_i32_1 : i32 to vector<1x290xi32>
    %10 = arith.cmpi slt, %6, %9 : vector<1x290xi32>
    %c0_i32_2 = arith.constant 0 : i32
    %11 = arith.cmpi slt, %4, %c0_i32_2 : i32
    %12 = vector.broadcast %11 : i1 to vector<1x290xi1>
    %13 = vector.broadcast %12 : vector<1x290xi1> to vector<1x290xi1>
    %14 = arith.xori %10, %13 : vector<1x290xi1>
    %15 = arith.andi %14, %8 : vector<1x290xi1>
    %16 = vector.broadcast %4 : i32 to vector<1x290xi32>
    %17 = arith.addi %6, %16 : vector<1x290xi32>
    %18 = arith.select %15, %17, %6 : vector<1x290xi1>, vector<1x290xi32>
    %c15_i32_3 = arith.constant 15 : i32
    %19 = vector.broadcast %c15_i32_3 : i32 to vector<1x290xi32>
    %20 = arith.cmpi ne, %18, %19 : vector<1x290xi32>
    %c0_i32_4 = arith.constant 0 : i32
    %21 = vector.broadcast %c0_i32_4 : i32 to vector<1x290xi32>
    %22 = arith.cmpi ne, %18, %21 : vector<1x290xi32>
    %cst = arith.constant 0.000000e+00 : f32
    %23 = vector.broadcast %cst : f32 to vector<4x17xf32>
    %c0 = arith.constant 0 : index
    %c0_5 = arith.constant 0 : index
    %c0_6 = arith.constant 0 : index
    %24 = vector.load %arg2[%c0, %c0_5, %c0_6] : memref<1x4x256xf32, #tpu.memory_space<vmem>>, vector<1x4x256xf32>
    %25 = vector.shape_cast %24 : vector<1x4x256xf32> to vector<4x256xf32>
    %26 = tpu.concatenate %23, %25, %23 in 1 : vector<4x17xf32>, vector<4x256xf32>, vector<4x17xf32> -> vector<4x290xf32>
    %27 = arith.truncf %26 : vector<4x290xf32> to vector<4x290xbf16>
    %c4 = arith.constant 4 : index
    %c0_7 = arith.constant 0 : index
    %28 = vector.load %arg6[%c4, %c0_7] : memref<13x290xbf16, #tpu.memory_space<vmem>>, vector<4x290xbf16>
    tpu.vector_store %arg6[%c4, %c0_7], %27 {strides = array<i32>} : memref<13x290xbf16, #tpu.memory_space<vmem>>, vector<4x290xbf16>,
    %cst_8 = arith.constant 0.000000e+00 : f32
    %29 = vector.shape_cast %20 : vector<1x290xi1> to vector<1x290xi1>
    %30 = vector.broadcast %29 : vector<1x290xi1> to vector<4x290xi1>
    %31 = vector.broadcast %cst_8 : f32 to vector<4x290xf32>
    %32 = arith.select %30, %26, %31 : vector<4x290xi1>, vector<4x290xf32>
    %33 = arith.truncf %32 : vector<4x290xf32> to vector<4x290xbf16>
    %cst_9 = arith.constant 0.000000e+00 : f32
    %34 = vector.shape_cast %22 : vector<1x290xi1> to vector<1x290xi1>
    %35 = vector.broadcast %34 : vector<1x290xi1> to vector<4x290xi1>
    %36 = vector.broadcast %cst_9 : f32 to vector<4x290xf32>
    %37 = arith.select %35, %26, %36 : vector<4x290xi1>, vector<4x290xf32>
    %38 = arith.truncf %37 : vector<4x290xf32> to vector<4x290xbf16>
    %39 = vector.extract_strided_slice %33 {offsets = [0, 0], sizes = [4, 289], strides = [1, 1]} : vector<4x290xbf16> to vector<4x289xbf16>
    %c0_10 = arith.constant 0 : index
    %c1 = arith.constant 1 : index
    %40 = vector.load %arg6[%c0_10, %c1] : memref<13x290xbf16, #tpu.memory_space<vmem>>, vector<4x289xbf16>
    tpu.vector_store %arg6[%c0_10, %c1], %39 {strides = array<i32>} : memref<13x290xbf16, #tpu.memory_space<vmem>>, vector<4x289xbf16>,
    %41 = vector.extract_strided_slice %38 {offsets = [0, 1], sizes = [4, 289], strides = [1, 1]} : vector<4x290xbf16> to vector<4x289xbf16>
    %c8 = arith.constant 8 : index
    %c0_11 = arith.constant 0 : index
    %42 = vector.load %arg6[%c8, %c0_11] : memref<13x290xbf16, #tpu.memory_space<vmem>>, vector<4x289xbf16>
    tpu.vector_store %arg6[%c8, %c0_11], %41 {strides = array<i32>} : memref<13x290xbf16, #tpu.memory_space<vmem>>, vector<4x289xbf16>,
    %cst_12 = arith.constant 1.000000e+00 : bf16
    %43 = vector.broadcast %cst_12 : bf16 to vector<1x290xbf16>
    %c12 = arith.constant 12 : index
    %c0_13 = arith.constant 0 : index
    %44 = vector.load %arg6[%c12, %c0_13] : memref<13x290xbf16, #tpu.memory_space<vmem>>, vector<1x290xbf16>
    tpu.vector_store %arg6[%c12, %c0_13], %43 {strides = array<i32>} : memref<13x290xbf16, #tpu.memory_space<vmem>>, vector<1x290xbf16>,
    %c0_14 = arith.constant 0 : index
    %c0_15 = arith.constant 0 : index
    %c0_16 = arith.constant 0 : index
    %45 = vector.load %arg3[%c0_14, %c0_15, %c0_16] : memref<3x16x13xbf16, #tpu.memory_space<vmem>>, vector<1x16x13xbf16>
    %46 = vector.shape_cast %45 : vector<1x16x13xbf16> to vector<16x13xbf16>
    %c0_17 = arith.constant 0 : index
    %c1_18 = arith.constant 1 : index
    %47 = vector.load %arg6[%c0_17, %c1_18] : memref<13x290xbf16, #tpu.memory_space<vmem>>, vector<13x256xbf16>
    %cst_19 = arith.constant dense<0.000000e+00> : vector<16x256xf32>
    %48 = tpu.matmul %46, %47, %cst_19 {dimension_numbers = #tpu.dot_dimension_numbers<[1], [0], [0], [1], [0, 0, 1, 1], [], []>} : vector<16x13xbf16>, vector<13x256xbf16>, vector<16x256xf32> -> vector<16x256xf32>
    %c1_20 = arith.constant 1 : index
    %c0_21 = arith.constant 0 : index
    %c0_22 = arith.constant 0 : index
    %49 = vector.load %arg3[%c1_20, %c0_21, %c0_22] : memref<3x16x13xbf16, #tpu.memory_space<vmem>>, vector<1x16x13xbf16>
    %50 = vector.shape_cast %49 : vector<1x16x13xbf16> to vector<16x13xbf16>
    %c0_23 = arith.constant 0 : index
    %c17 = arith.constant 17 : index
    %51 = vector.load %arg6[%c0_23, %c17] : memref<13x290xbf16, #tpu.memory_space<vmem>>, vector<13x256xbf16>
    %cst_24 = arith.constant dense<0.000000e+00> : vector<16x256xf32>
    %52 = tpu.matmul %50, %51, %cst_24 {dimension_numbers = #tpu.dot_dimension_numbers<[1], [0], [0], [1], [0, 0, 1, 1], [], []>} : vector<16x13xbf16>, vector<13x256xbf16>, vector<16x256xf32> -> vector<16x256xf32>
    %53 = arith.addf %48, %52 : vector<16x256xf32>
    %c2 = arith.constant 2 : index
    %c0_25 = arith.constant 0 : index
    %c0_26 = arith.constant 0 : index
    %54 = vector.load %arg3[%c2, %c0_25, %c0_26] : memref<3x16x13xbf16, #tpu.memory_space<vmem>>, vector<1x16x13xbf16>
    %55 = vector.shape_cast %54 : vector<1x16x13xbf16> to vector<16x13xbf16>
    %c0_27 = arith.constant 0 : index
    %c33 = arith.constant 33 : index
    %56 = vector.load %arg6[%c0_27, %c33] : memref<13x290xbf16, #tpu.memory_space<vmem>>, vector<13x256xbf16>
    %cst_28 = arith.constant dense<0.000000e+00> : vector<16x256xf32>
    %57 = tpu.matmul %55, %56, %cst_28 {dimension_numbers = #tpu.dot_dimension_numbers<[1], [0], [0], [1], [0, 0, 1, 1], [], []>} : vector<16x13xbf16>, vector<13x256xbf16>, vector<16x256xf32> -> vector<16x256xf32>
    %58 = arith.addf %53, %57 : vector<16x256xf32>
    %c0_29 = arith.constant 0 : index
    %59 = memref.load %arg4[%c0_29] : memref<1xf32, #tpu.memory_space<smem>>
    %cst_30 = arith.constant 0.000000e+00 : f32
    %60 = vector.broadcast %cst_30 : f32 to vector<16x256xf32>
    %61 = arith.cmpf ogt, %58, %60 : vector<16x256xf32>
    %62 = vector.broadcast %59 : f32 to vector<16x256xf32>
    %63 = arith.mulf %62, %58 : vector<16x256xf32>
    %64 = arith.select %61, %58, %63 : vector<16x256xi1>, vector<16x256xf32>
    %65 = arith.truncf %64 : vector<16x256xf32> to vector<16x256xbf16>
    %c0_31 = arith.constant 0 : index
    %c0_32 = arith.constant 0 : index
    %c0_33 = arith.constant 0 : index
    %66 = vector.load %arg5[%c0_31, %c0_32, %c0_33] : memref<1x16x256xbf16, #tpu.memory_space<vmem>>, vector<1x16x256xbf16>
    %67 = vector.shape_cast %66 : vector<1x16x256xbf16> to vector<16x256xbf16>
    %68 = vector.shape_cast %65 : vector<16x256xbf16> to vector<1x16x256xbf16>
    tpu.vector_store %arg5[%c0_31, %c0_32, %c0_33], %68 {strides = array<i32>} : memref<1x16x256xbf16, #tpu.memory_space<vmem>>, vector<1x16x256xbf16>,
    return
  }
  func.func @transform_0(%arg0: i32, %arg1: i32) -> (i32, i32, i32) {
    %c0_i32 = arith.constant 0 : i32
    %c0_i32_0 = arith.constant 0 : i32
    %c0_i32_1 = arith.constant 0 : i32
    return %arg0, %c0_i32, %c0_i32_0 : i32, i32, i32
  }
  func.func @transform_1(%arg0: i32, %arg1: i32) -> (i32, i32, i32) {
    %c0_i32 = arith.constant 0 : i32
    %c0_i32_0 = arith.constant 0 : i32
    %c0_i32_1 = arith.constant 0 : i32
    %c0_i32_2 = arith.constant 0 : i32
    return %c0_i32, %c0_i32_0, %c0_i32_1 : i32, i32, i32
  }
  func.func @transform_2(%arg0: i32, %arg1: i32) -> i32 {
    %c0_i32 = arith.constant 0 : i32
    %c0_i32_0 = arith.constant 0 : i32
    return %c0_i32 : i32
  }
  func.func @transform_3(%arg0: i32, %arg1: i32) -> (i32, i32, i32) {
    %c0_i32 = arith.constant 0 : i32
    %c0_i32_0 = arith.constant 0 : i32
    return %arg0, %c0_i32, %arg1 : i32, i32, i32
  }
}

</mosaic_0001>

<llo_original>
// kernel: upsample_block.1
$region0: #{upsample_block.1}
  #allocation0 [shape = 'u32[]', space=smem, size = 0x4, offset = 0x4, fixed_abs, tag = 'smem constant byte address 0x4 - core index']
  #allocation1 [shape = 'u32[144,128]{1,0:T(1,128)}', space=vmem, size = 0x12000, scoped, tag = 'internal scratch']
  #allocation2 [shape = 'bf16[13,290]{1,0:T(8,128)(2,1)}', space=vmem, size = 0x3000, scoped, tag = 'scratch operand']
  #allocation3 [shape = 'f32[1]{0:T(128)S(6)}', space=smem, size = 0x200, scoped, tag = 'scoped memory for upsample_block.1']
  %s0 = inlined_call_operand.hbm [shape: f32[2,4,256], index: 0, kind: input, shape index: {}]
  %s1 = inlined_call_operand.hbm [shape: bf16[3,16,13], index: 1, kind: input, shape index: {}]
  %s2 = inlined_call_operand.<no memory space> [shape: f32[1], index: 2, kind: input, shape index: {}]
  %s3 = inlined_call_operand.hbm [shape: bf16[2,16,256], index: 3, kind: output, shape index: {}]
  %s4 = sld [smem:[#allocation0]]
  $region53: #{upsample_block.1} parent=0
    _
  %s6 = ssub.s32 1, %s4
  %s7 = scalar_select 0, %s6, %s4
  %8 = sst [smem:[#allocation3]] %s2
  $region1: #{upsample_block.1} parent=0
    #allocation4 [shape = 'u8[8192]{0}', space=vmem, size = 0x2000, scoped, tag = 'input window, operand 0']
    #allocation5 [shape = 's32[2]{0}', space=sflag, size = 0x8, scoped, tag = 'scoped memory for upsample_block.1']
    #allocation6 [shape = 's32[2]{0}', space=sflag, size = 0x8, scoped, tag = 'scoped memory for upsample_block.1']
    #allocation7 [shape = 'u8[12288]{0}', space=vmem, size = 0x3000, scoped, tag = 'input window, operand 1, single buffered']
    #allocation8 [shape = 's32[1]{0}', space=sflag, size = 0x4, scoped, tag = 'scoped memory for upsample_block.1']
    #allocation9 [shape = 'u8[16384]{0}', space=vmem, size = 0x4000, scoped, tag = 'output window, operand 0']
    %9 = vsyncpa [#allocation5], 0
    %s10 = scalar_lea.sflag [#allocation5], 1
    %11 = vsyncpa %s10, 0
    %12 = vsyncpa [#allocation8], 0
    %13 = vsyncpa [#allocation6], 0
    %s14 = scalar_lea.sflag [#allocation6], 1
    %15 = vsyncpa %s14, 0
    loop: start=0, step=1, limit=4
    $region2: #{upsample_block.1} parent=1 // loop_pre_header
      _
    $region3: #{upsample_block.1} parent=1 // loop_header
      %s17 = sphi 0, %s21
      %p18 = scmp.ge.s32.totalorder %s17, 4
      %s24 = sphi 0, %s36
      %s25 = sphi 0, %s32
      %s26 = sphi 0, %s24
      %s27 = sphi 0, %s25
      %s28 = sphi 0, %s26
      %s29 = sphi 0, %s27
      %s39 = sphi 0, %s41
      %s42 = sphi 0, %s39
      %s43 = sphi 0, %s42
      %s59 = sphi 0, %s43
      %s63 = sphi 0, %s63
      %s65 = sphi 0, %s63
      %s66 = sphi 0, %s65
      %s80 = sphi 0, %s66
      %s84 = sphi 0, %s84
      %s86 = sphi 0, %s84
      %s87 = sphi 0, %s86
      %s101 = sphi 0, %s87
      %s109 = sphi 0, %s111
      %s112 = sphi 0, %s109
      %s113 = sphi 0, %s112
      %s129 = sphi 0, %s113
    $region4: #{upsample_block.1} parent=1 // loop_header_branch
      %20 = sbr.rel (%p18) target = $region8
    $region5: #{upsample_block.1} parent=1 // loop_body
      %s22 = ssub.s32 %s17, 1
      %s23 = ssub.s32 %s17, 2
      %s30 = sadd.s32 1, %s25
      %p31 = scmp.ge.s32.totalorder %s30, 1
      %s32 = scalar_select %p31, 0, %s30
      %s33 = sadd.s32 1, %s24
      %s34 = scalar_select %p31, %s33, %s24
      %p35 = scmp.ge.s32.totalorder %s34, 2
      %s36 = scalar_select %p35, 0, %s34
      %s37 = ssub.s32 %s24, %s36
      %p38 = scmp.eq.s32.totalorder %s37, 0
      %s40 = sadd.s32 %s39, 1
      %s41 = scalar_select %p38, %s39, %s40
      %p44 = pneg %p38
      %p45 = scmp.eq.s32.totalorder %s17, 1
      %p46 = por %p44, %p45
      %p47 = scmp.ne.s32.totalorder %s39, %s42
      %p48 = scmp.eq.s32.totalorder %s17, 0
      %p49 = por %p47, %p48
      %p50 = scmp.ne.s32.totalorder %s39, %s42
      %p51 = scmp.eq.s32.totalorder %s22, 1
      %p52 = por %p50, %p51
      %p53 = scmp.ne.s32.totalorder %s42, %s43
      %p54 = scmp.eq.s32.totalorder %s22, 0
      %p55 = por %p53, %p54
      %p56 = scmp.ne.s32.totalorder %s42, %s43
      %p57 = scmp.eq.s32.totalorder %s23, 1
      %p58 = por %p56, %p57
      %p60 = scmp.ne.s32.totalorder %s43, %s59
      %p61 = scmp.eq.s32.totalorder %s23, 0
      %p62 = por %p60, %p61
      %s64 = sadd.s32 %s63, 1
      %p67 = scmp.eq.s32.totalorder %s17, 1
      %p68 = scmp.ne.s32.totalorder %s63, %s65
      %p69 = scmp.eq.s32.totalorder %s17, 0
      %p70 = por %p68, %p69
      %p71 = scmp.ne.s32.totalorder %s63, %s65
      %p72 = scmp.eq.s32.totalorder %s22, 1
      %p73 = por %p71, %p72
      %p74 = scmp.ne.s32.totalorder %s65, %s66
      %p75 = scmp.eq.s32.totalorder %s22, 0
      %p76 = por %p74, %p75
      %p77 = scmp.ne.s32.totalorder %s65, %s66
      %p78 = scmp.eq.s32.totalorder %s23, 1
      %p79 = por %p77, %p78
      %p81 = scmp.ne.s32.totalorder %s66, %s80
      %p82 = scmp.eq.s32.totalorder %s23, 0
      %p83 = por %p81, %p82
      %s85 = sadd.s32 %s84, 1
      %p88 = scmp.eq.s32.totalorder %s17, 1
      %p89 = scmp.ne.s32.totalorder %s84, %s86
      %p90 = scmp.eq.s32.totalorder %s17, 0
      %p91 = por %p89, %p90
      %p92 = scmp.ne.s32.totalorder %s84, %s86
      %p93 = scmp.eq.s32.totalorder %s22, 1
      %p94 = por %p92, %p93
      %p95 = scmp.ne.s32.totalorder %s86, %s87
      %p96 = scmp.eq.s32.totalorder %s22, 0
      %p97 = por %p95, %p96
      %p98 = scmp.ne.s32.totalorder %s86, %s87
      %p99 = scmp.eq.s32.totalorder %s23, 1
      %p100 = por %p98, %p99
      %p102 = scmp.ne.s32.totalorder %s87, %s101
      %p103 = scmp.eq.s32.totalorder %s23, 0
      %p104 = por %p102, %p103
      %s105 = ssub.s32 %s24, %s36
      %s106 = ssub.s32 %s25, %s32
      %s107 = sor.u32 %s105, %s106
      %p108 = scmp.eq.s32.totalorder %s107, 0
      %s110 = sadd.s32 %s109, 1
      %s111 = scalar_select %p108, %s109, %s110
      %p114 = pneg %p108
      %p115 = scmp.eq.s32.totalorder %s17, 1
      %p116 = por %p114, %p115
      %p117 = scmp.ne.s32.totalorder %s109, %s112
      %p118 = scmp.eq.s32.totalorder %s17, 0
      %p119 = por %p117, %p118
      %p120 = scmp.ne.s32.totalorder %s109, %s112
      %p121 = scmp.eq.s32.totalorder %s22, 1
      %p122 = por %p120, %p121
      %p123 = scmp.ne.s32.totalorder %s112, %s113
      %p124 = scmp.eq.s32.totalorder %s22, 0
      %p125 = por %p123, %p124
      %p126 = scmp.ne.s32.totalorder %s112, %s113
      %p127 = scmp.eq.s32.totalorder %s23, 1
      %p128 = por %p126, %p127
      %p130 = scmp.ne.s32.totalorder %s113, %s129
      %p131 = scmp.eq.s32.totalorder %s23, 0
      %p132 = por %p130, %p131
      %p133 = scmp.le.s32.totalorder 1, %s17
      %p134 = scmp.lt.s32.totalorder %s17, 3
      %p135 = pnand %p133, %p134
      %p136 = pneg %p135
      // Predicated region
      $region9: #{upsample_block.1} parent=5 // pred_check
        _
      $region10: #{upsample_block.1} parent=5 // pred_check_branch
        %138 = sbr.rel (%p135) target = $region12
      $region11: #{upsample_block.1} parent=5 // pred_region
        %s139 = ssub.s32 %s17, 1
        // Predicated region
        $region13: #{upsample_block.1} parent=11 // pred_check
          %p140 = pneg %p76
        $region14: #{upsample_block.1} parent=11 // pred_check_branch
          %142 = sbr.rel (%p140) target = $region16
        $region15: #{upsample_block.1} parent=11 // pred_region
          %s144 = ssub.s32 384, 384
          %145 = vsyncadd [#allocation8], %s144
          %s146 = sshll.u32 [#allocation7], 4
          %s147 = int_to_ptr.vmem [resolvable:$true] %s146
          %152 = dma.hbm_to_vmem [thread:$0]  %s1, 384, %s147, [#allocation8], 64, 64, 4
        $region16: #{upsample_block.1} parent=11 // pred_fallthru
          _
        // Predicated region
        $region17: #{upsample_block.1} parent=11 // pred_check
          %p153 = pneg %p97
        $region18: #{upsample_block.1} parent=11 // pred_check_branch
          %155 = sbr.rel (%p153) target = $region20
        $region19: #{upsample_block.1} parent=11 // pred_region
          _
        $region20: #{upsample_block.1} parent=11 // pred_fallthru
          _
      $region12: #{upsample_block.1} parent=5 // pred_fallthru
        _
      %p156 = scmp.lt.s32.totalorder %s17, 2
      // Predicated region
      $region21: #{upsample_block.1} parent=5 // pred_check
        %p157 = pneg %p156
      $region22: #{upsample_block.1} parent=5 // pred_check_branch
        %159 = sbr.rel (%p157) target = $region24
      $region23: #{upsample_block.1} parent=5 // pred_region
        // Predicated region
        $region25: #{upsample_block.1} parent=23 // pred_check
          %p160 = pneg %p49
        $region26: #{upsample_block.1} parent=23 // pred_check_branch
          %162 = sbr.rel (%p160) target = $region28
        $region27: #{upsample_block.1} parent=23 // pred_region
          %s163 = sand.u32 %s39, 1
          %s164 = scalar_lea.sflag [#allocation5], %s163
          %s165 = sand.u32 %s39, 1
          %s166 = smul.addr %s165, 8
          %s167 = scalar_lea.vmem [#allocation4], %s166
          %s169 = ssub.s32 128, 128
          %170 = vsyncadd %s164, %s169
          %s171 = smul.addr %s24, 2
          %s172 = smul.addr %s171, 64
          %s173 = scalar_lea.hbm %s0, %s172
          %s175 = sshll.u32 %s167, 4
          %s176 = int_to_ptr.vmem [resolvable:$true] %s175
          %178 = dma.hbm_to_vmem [thread:$0]  %s173, 128, %s176, %s164
        $region28: #{upsample_block.1} parent=23 // pred_fallthru
          _
      $region24: #{upsample_block.1} parent=5 // pred_fallthru
        _
      %p179 = scmp.le.s32.totalorder 1, %s17
      %p180 = scmp.lt.s32.totalorder %s17, 3
      %p181 = pnand %p179, %p180
      %p182 = pneg %p181
      // Predicated region
      $region29: #{upsample_block.1} parent=5 // pred_check
        _
      $region30: #{upsample_block.1} parent=5 // pred_check_branch
        %184 = sbr.rel (%p181) target = $region32
      $region31: #{upsample_block.1} parent=5 // pred_region
        %s185 = ssub.s32 %s17, 1
        %s186 = sand.u32 %s42, 1
        %s187 = scalar_lea.sflag [#allocation5], %s186
        %s188 = sand.u32 %s42, 1
        %s189 = smul.addr %s188, 8
        %s190 = scalar_lea.vmem [#allocation4], %s189
        // Predicated region
        $region33: #{upsample_block.1} parent=31 // pred_check
          %p191 = pneg %p55
        $region34: #{upsample_block.1} parent=31 // pred_check_branch
          %193 = sbr.rel (%p191) target = $region36
        $region35: #{upsample_block.1} parent=31 // pred_region
          %194 = dma.done %s187, 128
        $region36: #{upsample_block.1} parent=31 // pred_fallthru
          _
        // Predicated region
        $region37: #{upsample_block.1} parent=31 // pred_check
          %p195 = pneg %p76
        $region38: #{upsample_block.1} parent=31 // pred_check_branch
          %197 = sbr.rel (%p195) target = $region40
        $region39: #{upsample_block.1} parent=31 // pred_region
          %198 = dma.done [#allocation8], 384
        $region40: #{upsample_block.1} parent=31 // pred_fallthru
          _
        %s199 = sand.u32 %s42, 1
        %s200 = scalar_lea.sflag [#allocation5], %s199
        %s201 = sand.u32 %s42, 1
        %s202 = smul.addr %s201, 8
        %s203 = scalar_lea.vmem [#allocation4], %s202
        %p204 = pneg %p55
        %p205 = pneg %p52
        %p206 = pneg %p76
        %p207 = pneg %p73
        %p208 = pneg %p97
        %p209 = pneg %p94
        %p210 = pneg %p125
        %p211 = pneg %p122
        %s212 = sand.u32 %s112, 1
        %s213 = scalar_lea.sflag [#allocation6], %s212
        %s214 = sand.u32 %s112, 1
        %s215 = smul.addr %s214, 16
        %s216 = scalar_lea.vmem [#allocation9], %s215
        %s217 = smul.u32 2, %s27
        %v220 = vlaneseq
        %v221 = vand.u32 %v220, 127
        %v222 = vadd.s32 %v221, 128
        %v223 = vadd.s32 %v221, 256
        %v224 = vadd.s32 %v221, 15
        %v225 = vadd.s32 %v222, 15
        %v226 = vadd.s32 %v223, 15
        %vm227 = vcmp.lt.s32.totalorder %v224, 0
        %v228 = vsub.s32 0, %v224
        %v229 = vsel %vm227, %v228, %v224
        %v230 = vshrl.u32 %v229, 4
        %v231 = vand.u32 %v229, 15
        %v232 = vsub.s32 0, %v231
        %v233 = vsel %vm227, %v232, %v231
        %vm234 = vcmp.lt.s32.totalorder %v225, 0
        %v235 = vsub.s32 0, %v225
        %v236 = vsel %vm234, %v235, %v225
        %v237 = vshrl.u32 %v236, 4
        %v238 = vand.u32 %v236, 15
        %v239 = vsub.s32 0, %v238
        %v240 = vsel %vm234, %v239, %v238
        %vm241 = vcmp.lt.s32.totalorder %v226, 0
        %v242 = vsub.s32 0, %v226
        %v243 = vsel %vm241, %v242, %v226
        %v244 = vshrl.u32 %v243, 4
        %v245 = vand.u32 %v243, 15
        %v246 = vsub.s32 0, %v245
        %v247 = vsel %vm241, %v246, %v245
        %vm248 = vcmp.ne.s32.totalorder %v233, 0
        %vm249 = vcmp.ne.s32.totalorder %v240, 0
        %vm250 = vcmp.ne.s32.totalorder %v247, 0
        %vm251 = vcmp.lt.s32.totalorder %v233, 0
        %vm252 = vcmp.lt.s32.totalorder %v240, 0
        %vm253 = vcmp.lt.s32.totalorder %v247, 0
        %vm254 = vmand %vm251, %vm248
        %vm255 = vmand %vm252, %vm249
        %vm256 = vmand %vm253, %vm250
        %v257 = vadd.s32 %v233, 16
        %v258 = vadd.s32 %v240, 16
        %v259 = vadd.s32 %v247, 16
        %v260 = vsel %vm254, %v257, %v233
        %v261 = vsel %vm255, %v258, %v240
        %v262 = vsel %vm256, %v259, %v247
        %vm263 = vcmp.ne.s32.totalorder %v260, 15
        %vm264 = vcmp.ne.s32.totalorder %v261, 15
        %vm265 = vcmp.ne.s32.totalorder %v262, 15
        %vm266 = vcmp.ne.s32.totalorder %v260, 0
        %vm267 = vcmp.ne.s32.totalorder %v261, 0
        %vm268 = vcmp.ne.s32.totalorder %v262, 0
        %v269 = vld [vmem:[%s190] sm:$0xff]
        %v271 = vcombine.high %v269, %v269
        %272 = vrot.lane.b32.xlu0 %v269, 17
        %v273 = vpop.permute.xlu0 %272
        %274 = vrot.lane.b32.xlu0 %v271, 17
        %v275 = vpop.permute.xlu0 %274
        %vm276 = vcmask 138240
        %v277 = vsel %vm276, %v273, %v275
        %v281 = vsel %vm276, 0.0, %v273
        %v282 = vsel %vm276, %v275, 0.0
        %v283 = vpack.c.bf16 %v281, %v281
        %v284 = vpack.c.bf16 %v277, %v277
        %v285 = vpack.c.bf16 %v282, %v282
        %v289 = vunpack.c.l.b16 %v283
        %v290 = vunpack.c.l.b16 %v284
        %v291 = vunpack.c.l.b16 %v285
        %v292 = vpack.c.b16 %v290, %v289
        %v293 = vpack.c.b16 %v291, %v291
        %v294 = vrot.slane %v292, 6
        %v295 = vrot.slane %v293, 6
        %298 = vst [vmem:[#allocation2] sm:$0xcc] %v294
        %vm299 = vcmask 273410
        %300 = vst.msk [vmem:[#allocation2 + $0x8] sm:$0xc] %vm299, %v295
        %v301 = vsel %vm263, 1, 0
        %v302 = vsel %vm264, 1, 0
        %v303 = vsel %vm265, 1, 0
        %vm304 = vcmp.eq.s32.totalorder %v301, 1
        %vm305 = vcmp.eq.s32.totalorder %v302, 1
        %vm306 = vcmp.eq.s32.totalorder %v303, 1
        %v307 = vsel %vm304, %v281, 0.0
        %v308 = vsel %vm305, %v277, 0.0
        %v309 = vsel %vm306, %v282, 0.0
        %v310 = vpack.c.bf16 %v307, %v307
        %v311 = vpack.c.bf16 %v308, %v308
        %v312 = vpack.c.bf16 %v309, %v309
        %v313 = vsel %vm266, 1, 0
        %v314 = vsel %vm267, 1, 0
        %v315 = vsel %vm268, 1, 0
        %vm316 = vcmp.eq.s32.totalorder %v313, 1
        %vm317 = vcmp.eq.s32.totalorder %v314, 1
        %vm318 = vcmp.eq.s32.totalorder %v315, 1
        %v319 = vsel %vm316, %v281, 0.0
        %v320 = vsel %vm317, %v277, 0.0
        %v321 = vsel %vm318, %v282, 0.0
        %v322 = vpack.c.bf16 %v319, %v319
        %v323 = vpack.c.bf16 %v320, %v320
        %v324 = vpack.c.bf16 %v321, %v321
        %v328 = vunpack.c.l.b16 %v310
        %v329 = vunpack.c.l.b16 %v311
        %v330 = vunpack.c.l.b16 %v312
        %v331 = vpack.c.b16 %v329, %v328
        %v332 = vpack.c.b16 %v330, %v330
        %333 = vrot.lane.b32.xlu0 %v331, 1
        %v334 = vpop.permute.xlu0 %333
        %335 = vrot.lane.b32.xlu0 %v332, 1
        %v336 = vpop.permute.xlu0 %335
        %v337 = vrot.slane %v334, 4
        %vm338 = vcmask 7168
        %v339 = vsel %vm338, %v337, %v334
        %v340 = vsel %vm338, %v337, %v336
        %vm343 = vcmask 1041416
        %vm344 = vcmask 1045508
        %vm345 = vmor %vm344, %vm343
        %346 = vst.msk [vmem:[#allocation2] sm:$0x33] %vm345, %v339
        %vm347 = vcmask 271360
        %348 = vst.msk [vmem:[#allocation2 + $0x8] sm:$0x3] %vm347, %v340
        %v352 = vunpack.c.l.b16 %v322
        %v353 = vunpack.c.l.b16 %v323
        %v354 = vunpack.c.l.b16 %v324
        %v355 = vpack.c.b16 %v353, %v352
        %v356 = vpack.c.b16 %v354, %v354
        %357 = vrot.lane.b32.xlu0 %v355, 127
        %v358 = vpop.permute.xlu0 %357
        %359 = vrot.lane.b32.xlu0 %v356, 127
        %v360 = vpop.permute.xlu0 %359
        %v361 = vrot.slane %v358, 4
        %v362 = vrot.slane %v360, 4
        %vm363 = vcmask 1043456
        %v364 = vsel %vm363, %v361, %v362
        %vm365 = vcmask 1039360
        %v366 = vsel %vm365, %v358, %v364
        %369 = vst [vmem:[#allocation2 + $0xc] sm:$0x33] %v366
        %vm370 = vcmask 263168
        %371 = vst.msk [vmem:[#allocation2 + $0x14] sm:$0x3] %vm370, %v360
        %vm372 = vcmask 1042434
        %vm373 = vsmask.f32 2304
        %vm374 = vmand %vm372, %vm373
        %vm375 = vcmask 1046534
        %vm376 = vsmask.f32 6400
        %vm377 = vmand %vm375, %vm376
        %vm378 = vmor %vm377, %vm374
        %v379 = vld [vmem:[#allocation2 + $0xc] sm:$0x44]
        %v380 = vsel %vm378, 1065369472, %v379
        %381 = vst [vmem:[#allocation2 + $0xc] sm:$0x44] %v380
        %vm382 = vcmask 272386
        %vm383 = vmand %vm382, %vm373
        %v384 = vld [vmem:[#allocation2 + $0x14] sm:$0x4]
        %v385 = vsel %vm383, 1065369472, %v384
        %386 = vst [vmem:[#allocation2 + $0x14] sm:$0x4] %v385
        %v387 = vld [vmem:[#allocation7] sm:$0xf]
        %v388 = vld [vmem:[#allocation7 + $0x4] sm:$0xf]
        %v389 = vld [vmem:[#allocation2] sm:$0xff]
        %v390 = vld [vmem:[#allocation2 + $0x8] sm:$0xf]
        %v391 = vld [vmem:[#allocation2 + $0xc] sm:$0x77]
        %v392 = vld [vmem:[#allocation2 + $0x14] sm:$0x7]
        %s393 = scalar_lea.vmem [#allocation7], 8
        %v394 = vld [vmem:[%s393] sm:$0xf]
        %v395 = vld [vmem:[%s393 + $0x4] sm:$0xf]
        %v398 = vunpack.c.l.b16 %v394
        %v399 = vunpack.c.l.b16 %v395
        %v400 = vpack.c.b16 %v399, %v398
        %v405 = vunpack.c.l.b16 %v389
        %v406 = vunpack.c.h.b16 %v389
        %v407 = vunpack.c.l.b16 %v390
        %v408 = vunpack.c.l.b16 %v391
        %v409 = vunpack.c.h.b16 %v391
        %v410 = vunpack.c.l.b16 %v392
        %v411 = vpack.c.b16 %v408, %v405
        %v412 = vpack.c.b16 %v409, %v406
        %v413 = vpack.c.b16 %v410, %v407
        %414 = vrot.lane.b32.xlu0 %v411, 111
        %v415 = vpop.permute.xlu0 %414
        %416 = vrot.lane.b32.xlu0 %v412, 111
        %v417 = vpop.permute.xlu0 %416
        %418 = vrot.lane.b32.xlu0 %v413, 111
        %v419 = vpop.permute.xlu0 %418
        %vm420 = vcmask 908288
        %v421 = vsel %vm420, %v415, %v417
        %v422 = vsel %vm420, %v417, %v419
        %vm423 = vcmask 105472
        %v425 = vsel %vm423, %v400, 0
        %vm427 = vcmask 1045504
        %vm428 = vcmask 1046528
        %v429 = vsel %vm427, 4294967295, 65535
        %v430 = vsel %vm428, %v429, 0
        %v432 = vand.u32 %v421, %v430
        %v435 = vand.u32 %v422, %v430
        %437 = vmatprep.subr.bf16.mxu0 %v435
        %438 = vmatpush1.bf16.msra.mxu0 %v432
        %439 = vmatprep.subr.bf16.mxu0 0
        %440 = vmatpush1.bf16.msra.mxu0 0
        %441 = vmatprep.subr.bf16.mxu0 0
        %442 = vmatpush1.bf16.msra.mxu0 0
        %443 = vmatprep.subr.bf16.mxu0 0
        %444 = vmatpush1.bf16.msra.mxu0 0
        %445 = vmatprep.subr.bf16.mxu0 0
        %446 = vmatpush1.bf16.msra.mxu0 0
        %447 = vmatprep.subr.bf16.mxu0 0
        %448 = vmatpush1.bf16.msra.mxu0 0
        %449 = vmatprep.subr.bf16.mxu0 0
        %450 = vmatpush1.bf16.msra.mxu0 0
        %451 = vmatprep.subr.bf16.mxu0 0
        %452 = vmatpush1.bf16.msra.mxu0 0
        %453 = vmatprep.subr.bf16.mxu0 0
        %454 = vmatpush1.bf16.msra.mxu0 0
        %455 = vmatprep.subr.bf16.mxu0 0
        %456 = vmatpush1.bf16.msra.mxu0 0
        %457 = vmatprep.subr.bf16.mxu0 0
        %458 = vmatpush1.bf16.msra.mxu0 0
        %459 = vmatprep.subr.bf16.mxu0 0
        %460 = vmatpush1.bf16.msra.mxu0 0
        %461 = vmatprep.subr.bf16.mxu0 0
        %462 = vmatpush1.bf16.msra.mxu0 0
        %463 = vmatprep.subr.bf16.mxu0 0
        %464 = vmatpush1.bf16.msra.mxu0 0
        %465 = vmatprep.subr.bf16.mxu0 0
        %466 = vmatpush1.bf16.msra.mxu0 0
        %467 = vmatprep.subr.bf16.mxu0 0
        %468 = vmatpush1.bf16.msra.mxu0 0
        %469 = vmatprep.mubr.bf16.mxu0 0
        %470 = vmatmul.mubr.bf16.gmra.mrb[0].mxu0 %v425
        %v471 = vpop.f32.mrb[0].mxu0
        %v472 = vadd.f32 0.0, %v471
        %v473 = vpop.f32.mrb[0].mxu0
        %v474 = vadd.f32 0.0, %v473
        %v475 = vpop.f32.mrb[0].mxu0
        %v476 = vadd.f32 0.0, %v475
        %v477 = vpop.f32.mrb[0].mxu0
        %v478 = vadd.f32 0.0, %v477
        %479 = vdwg.mxu0
        %v482 = vunpack.c.l.b16 %v387
        %v483 = vunpack.c.l.b16 %v388
        %v484 = vpack.c.b16 %v483, %v482
        %485 = vrot.lane.b32.xlu0 %v411, 127
        %v486 = vpop.permute.xlu0 %485
        %487 = vrot.lane.b32.xlu0 %v412, 127
        %v488 = vpop.permute.xlu0 %487
        %489 = vrot.lane.b32.xlu0 %v413, 127
        %v490 = vpop.permute.xlu0 %489
        %v491 = vsel %vm365, %v486, %v488
        %v492 = vsel %vm365, %v488, %v490
        %v494 = vsel %vm423, %v484, 0
        %v497 = vand.u32 %v491, %v430
        %v500 = vand.u32 %v492, %v430
        %502 = vmatprep.subr.bf16.mxu0 %v500
        %503 = vmatpush1.bf16.msra.mxu0 %v497
        %504 = vmatprep.subr.bf16.mxu0 0
        %505 = vmatpush1.bf16.msra.mxu0 0
        %506 = vmatprep.subr.bf16.mxu0 0
        %507 = vmatpush1.bf16.msra.mxu0 0
        %508 = vmatprep.subr.bf16.mxu0 0
        %509 = vmatpush1.bf16.msra.mxu0 0
        %510 = vmatprep.subr.bf16.mxu0 0
        %511 = vmatpush1.bf16.msra.mxu0 0
        %512 = vmatprep.subr.bf16.mxu0 0
        %513 = vmatpush1.bf16.msra.mxu0 0
        %514 = vmatprep.subr.bf16.mxu0 0
        %515 = vmatpush1.bf16.msra.mxu0 0
        %516 = vmatprep.subr.bf16.mxu0 0
        %517 = vmatpush1.bf16.msra.mxu0 0
        %518 = vmatprep.subr.bf16.mxu0 0
        %519 = vmatpush1.bf16.msra.mxu0 0
        %520 = vmatprep.subr.bf16.mxu0 0
        %521 = vmatpush1.bf16.msra.mxu0 0
        %522 = vmatprep.subr.bf16.mxu0 0
        %523 = vmatpush1.bf16.msra.mxu0 0
        %524 = vmatprep.subr.bf16.mxu0 0
        %525 = vmatpush1.bf16.msra.mxu0 0
        %526 = vmatprep.subr.bf16.mxu0 0
        %527 = vmatpush1.bf16.msra.mxu0 0
        %528 = vmatprep.subr.bf16.mxu0 0
        %529 = vmatpush1.bf16.msra.mxu0 0
        %530 = vmatprep.subr.bf16.mxu0 0
        %531 = vmatpush1.bf16.msra.mxu0 0
        %532 = vmatprep.subr.bf16.mxu0 0
        %533 = vmatpush1.bf16.msra.mxu0 0
        %534 = vmatprep.mubr.bf16.mxu0 0
        %535 = vmatmul.mubr.bf16.gmra.mrb[0].mxu0 %v494
        %v536 = vpop.f32.mrb[0].mxu0
        %v537 = vadd.f32 %v472, %v536
        %v538 = vpop.f32.mrb[0].mxu0
        %v539 = vadd.f32 %v474, %v538
        %v540 = vpop.f32.mrb[0].mxu0
        %v541 = vadd.f32 %v476, %v540
        %v542 = vpop.f32.mrb[0].mxu0
        %v543 = vadd.f32 %v478, %v542
        %544 = vdwg.mxu0
        %s545 = scalar_lea.vmem [#allocation7], 16
        %v546 = vld [vmem:[%s545] sm:$0xf]
        %v547 = vld [vmem:[%s545 + $0x4] sm:$0xf]
        %v550 = vunpack.c.l.b16 %v546
        %v551 = vunpack.c.l.b16 %v547
        %v552 = vpack.c.b16 %v551, %v550
        %553 = vrot.lane.b32.xlu0 %v411, 95
        %v554 = vpop.permute.xlu0 %553
        %555 = vrot.lane.b32.xlu0 %v412, 95
        %v556 = vpop.permute.xlu0 %555
        %557 = vrot.lane.b32.xlu0 %v413, 95
        %v558 = vpop.permute.xlu0 %557
        %vm559 = vcmask 777216
        %v560 = vsel %vm559, %v554, %v556
        %v561 = vsel %vm559, %v556, %v558
        %v563 = vsel %vm423, %v552, 0
        %v566 = vand.u32 %v560, %v430
        %v569 = vand.u32 %v561, %v430
        %571 = vmatprep.subr.bf16.mxu0 %v569
        %572 = vmatpush1.bf16.msra.mxu0 %v566
        %573 = vmatprep.subr.bf16.mxu0 0
        %574 = vmatpush1.bf16.msra.mxu0 0
        %575 = vmatprep.subr.bf16.mxu0 0
        %576 = vmatpush1.bf16.msra.mxu0 0
        %577 = vmatprep.subr.bf16.mxu0 0
        %578 = vmatpush1.bf16.msra.mxu0 0
        %579 = vmatprep.subr.bf16.mxu0 0
        %580 = vmatpush1.bf16.msra.mxu0 0
        %581 = vmatprep.subr.bf16.mxu0 0
        %582 = vmatpush1.bf16.msra.mxu0 0
        %583 = vmatprep.subr.bf16.mxu0 0
        %584 = vmatpush1.bf16.msra.mxu0 0
        %585 = vmatprep.subr.bf16.mxu0 0
        %586 = vmatpush1.bf16.msra.mxu0 0
        %587 = vmatprep.subr.bf16.mxu0 0
        %588 = vmatpush1.bf16.msra.mxu0 0
        %589 = vmatprep.subr.bf16.mxu0 0
        %590 = vmatpush1.bf16.msra.mxu0 0
        %591 = vmatprep.subr.bf16.mxu0 0
        %592 = vmatpush1.bf16.msra.mxu0 0
        %593 = vmatprep.subr.bf16.mxu0 0
        %594 = vmatpush1.bf16.msra.mxu0 0
        %595 = vmatprep.subr.bf16.mxu0 0
        %596 = vmatpush1.bf16.msra.mxu0 0
        %597 = vmatprep.subr.bf16.mxu0 0
        %598 = vmatpush1.bf16.msra.mxu0 0
        %599 = vmatprep.subr.bf16.mxu0 0
        %600 = vmatpush1.bf16.msra.mxu0 0
        %601 = vmatprep.subr.bf16.mxu0 0
        %602 = vmatpush1.bf16.msra.mxu0 0
        %603 = vmatprep.mubr.bf16.mxu0 0
        %604 = vmatmul.mubr.bf16.gmra.mrb[0].mxu0 %v563
        %v605 = vpop.f32.mrb[0].mxu0
        %v606 = vadd.f32 0.0, %v605
        %v607 = vpop.f32.mrb[0].mxu0
        %v608 = vadd.f32 0.0, %v607
        %v609 = vpop.f32.mrb[0].mxu0
        %v610 = vadd.f32 0.0, %v609
        %v611 = vpop.f32.mrb[0].mxu0
        %v612 = vadd.f32 0.0, %v611
        %613 = vdwg.mxu0
        %v614 = vadd.f32 %v537, %v606
        %v615 = vadd.f32 %v539, %v608
        %v616 = vadd.f32 %v541, %v610
        %v617 = vadd.f32 %v543, %v612
        %s618 = sld [smem:[#allocation3]]
        %vm619 = vcmp.gt.f32.partialorder %v614, 0.0
        %vm620 = vcmp.gt.f32.partialorder %v615, 0.0
        %vm621 = vcmp.gt.f32.partialorder %v616, 0.0
        %vm622 = vcmp.gt.f32.partialorder %v617, 0.0
        %v623 = vstv %s618
        %v624 = vmul.f32 %v623, %v614
        %v625 = vmul.f32 %v623, %v615
        %v626 = vmul.f32 %v623, %v616
        %v627 = vmul.f32 %v623, %v617
        %v628 = vsel %vm619, %v614, %v624
        %v629 = vsel %vm620, %v615, %v625
        %v630 = vsel %vm621, %v616, %v626
        %v631 = vsel %vm622, %v617, %v627
        %v632 = vpack.c.bf16 %v630, %v628
        %v633 = vpack.c.bf16 %v631, %v629
        %v636 = vunpack.c.l.b16 %v632
        %v637 = vunpack.c.l.b16 %v633
        %v638 = vunpack.c.h.b16 %v632
        %v639 = vunpack.c.h.b16 %v633
        %v640 = vpack.c.b16 %v637, %v636
        %v641 = vpack.c.b16 %v639, %v638
        %644 = vst [vmem:[%s216] sm:$0xff] %v640
        %645 = vst [vmem:[%s216 + $0x8] sm:$0xff] %v641
        %s646 = sand.u32 %s112, 1
        %s647 = scalar_lea.sflag [#allocation6], %s646
        %s648 = sand.u32 %s112, 1
        %s649 = smul.addr %s648, 16
        %s650 = scalar_lea.vmem [#allocation9], %s649
        // Predicated region
        $region41: #{upsample_block.1} parent=31 // pred_check
          %p651 = pneg %p122
        $region42: #{upsample_block.1} parent=31 // pred_check_branch
          %653 = sbr.rel (%p651) target = $region44
        $region43: #{upsample_block.1} parent=31 // pred_region
          %s654 = smul.u32 2, %s27
          %s656 = ssub.s32 256, 256
          %657 = vsyncadd %s647, %s656
          %s658 = smul.addr %s26, 4
          %s659 = sadd.s32 %s654, %s658
          %s660 = smul.addr %s659, 64
          %s661 = scalar_lea.hbm %s3, %s660
          %s662 = sshll.u32 %s650, 4
          %s663 = int_to_ptr.vmem [resolvable:$true] %s662
          %668 = dma.vmem_to_hbm [thread:$0]  %s663, 256, %s661, %s647, 128, 128, 8
        $region44: #{upsample_block.1} parent=31 // pred_fallthru
          _
      $region32: #{upsample_block.1} parent=5 // pred_fallthru
        _
      %p669 = scmp.le.s32.totalorder 2, %s17
      // Predicated region
      $region45: #{upsample_block.1} parent=5 // pred_check
        %p670 = pneg %p669
      $region46: #{upsample_block.1} parent=5 // pred_check_branch
        %672 = sbr.rel (%p670) target = $region48
      $region47: #{upsample_block.1} parent=5 // pred_region
        %s673 = ssub.s32 %s17, 2
        // Predicated region
        $region49: #{upsample_block.1} parent=47 // pred_check
          %p674 = pneg %p128
        $region50: #{upsample_block.1} parent=47 // pred_check_branch
          %676 = sbr.rel (%p674) target = $region52
        $region51: #{upsample_block.1} parent=47 // pred_region
          %s677 = sand.u32 %s113, 1
          %s678 = scalar_lea.sflag [#allocation6], %s677
          %s679 = sand.u32 %s113, 1
          %s680 = smul.addr %s679, 16
          %s681 = scalar_lea.vmem [#allocation9], %s680
          %682 = dma.done %s678, 256
        $region52: #{upsample_block.1} parent=47 // pred_fallthru
          _
      $region48: #{upsample_block.1} parent=5 // pred_fallthru
        _
    $region6: #{upsample_block.1} parent=1 // loop_footer
      %s21 = sadd.s32 1, %s17
    $region7: #{upsample_block.1} parent=1 // loop_footer_branch
      %16 = sbr.rel target = $region3
    $region8: #{upsample_block.1} parent=1 // loop_exit
      _
    %683 = vsyncpa [#allocation5], 1
    %s684 = scalar_lea.sflag [#allocation5], 1
    %685 = vsyncpa %s684, 1
    %686 = vsyncpa [#allocation8], 1
    %687 = vsyncpa [#allocation6], 1
    %s688 = scalar_lea.sflag [#allocation6], 1
    %689 = vsyncpa %s688, 1

</llo_original>
